<compile_context>
chip_gen: v5e
topology: v5e:2x2
jax: 0.10.0
libtpu: 0.0.40
codegen_flags: <defaults>
</compile_context>

<pallas_src>
import functools

import jax
import jax.numpy as jnp
from jax.experimental import pallas as pl
from jax.experimental.pallas import tpu as pltpu

SMOOTH = 1.0

# Per-step block budget in BYTES per input per pipeline buffer.
_TARGET_BLOCK_BYTES = 4 * 1024 * 1024

# Sublane tile (granularity of the block's second-to-last dim) per itemsize.
_SUBLANE = {4: 8, 2: 16, 1: 32}

# Below this per-(sample, channel-0) payload size, strided NCHW DMA chunks
# are too small -> pre-slice channel 0 into a contiguous buffer first.
_PRESLICE_BYTES = 8192


def _dice_kernel(yp_ref, yt_ref, out_ref, acc_ref, *, n_rows, need_row_mask):
    """Accumulates sum(yp*yt) and sum(yp)+sum(yt) of channel 0 per batch block."""
    ri = pl.program_id(1)
    last_ri = pl.num_programs(1) - 1

    # New batch block -> reset the vector accumulator.
    @pl.when(ri == 0)
    def _():
        acc_ref[...] = jnp.zeros_like(acc_ref)

    def accumulate(mask_rows):
        yp = yp_ref[...].astype(jnp.float32)   # (bn, 1, tr, lanes)
        yt = yt_ref[...].astype(jnp.float32)
        if mask_rows:
            # Zero out-of-range rows BEFORE the multiply/add so OOB garbage
            # (including NaN bit patterns) never reaches the accumulator.
            blk = yp.shape
            r_idx = jax.lax.broadcasted_iota(jnp.int32, blk, 2) + ri * blk[2]
            m = r_idx < n_rows
            yp = jnp.where(m, yp, 0.0)
            yt = jnp.where(m, yt, 0.0)
        # Vreg-wise partial reduction over the (batch, channel) block axes;
        # stays on the VPU and is hidden under the input DMA.
        acc_ref[0] += jnp.sum(yp * yt, axis=(0, 1))   # -> (tr, lanes)
        acc_ref[1] += jnp.sum(yp + yt, axis=(0, 1))

    if need_row_mask:
        # Only the tail row-block pays for the iota/compare/select path.
        @pl.when(ri != last_ri)
        def _():
            accumulate(False)

        @pl.when(ri == last_ri)
        def _():
            accumulate(True)
    else:
        accumulate(False)

    # Epilogue (once per batch block): single cross-lane reduce + scalar store.
    @pl.when(ri == last_ri)
    def _():
        out_ref[0, 0] = jnp.sum(acc_ref[0])
        out_ref[0, 1] = jnp.sum(acc_ref[1])


def _largest_divisor_leq(n, cap):
    cap = min(cap, n)
    for d in range(cap, 0, -1):
        if n % d == 0:
            return d
    return 1


def _pick_lanes(payload, fallback):
    """Lane extent for the row-major (rows, lanes) view of one payload."""
    if payload % 128 == 0:
        return 128
    d = _largest_divisor_leq(payload, 512)
    return d if d >= 8 else fallback


def dice_loss(y_pred, y_true, *, target_block_bytes=_TARGET_BLOCK_BYTES):
    """Pallas implementation of DiceLoss.forward (returns a scalar)."""
    assert y_pred.shape == y_true.shape, f"{y_pred.shape} {y_true.shape}"
    assert y_pred.ndim >= 2

    n_batch, n_chan = y_pred.shape[0], y_pred.shape[1]
    payload = 1
    for d in y_pred.shape[2:]:
        payload *= d
    assert payload >= 1

    itemsize = jnp.dtype(y_pred.dtype).itemsize
    sublane = _SUBLANE.get(itemsize, 8)
    target_elems = max(1, target_block_bytes // itemsize)

    # Small per-sample channel-0 payloads make bn>1 blocks a series of tiny
    # strided DMA chunks; pre-slice channel 0 into a contiguous buffer first
    # (one extra pass over channel-0 bytes only).
    if n_chan > 1 and n_batch > 1 and payload * itemsize < _PRESLICE_BYTES:
        y_pred = y_pred[:, :1]
        y_true = y_true[:, :1]
        n_chan = 1

    # Lane-dense row-major view of the per-(sample, channel) payload.
    fallback_lanes = y_pred.shape[-1] if y_pred.ndim >= 3 else payload
    lanes = _pick_lanes(payload, fallback_lanes)
    n_rows = payload // lanes

    yp4 = y_pred.reshape(n_batch, n_chan, n_rows, lanes)
    yt4 = y_true.reshape(n_batch, n_chan, n_rows, lanes)

    # Tile sizes.  bn always divides n_batch (no batch mask).  tr is a divisor
    # of n_rows when a reasonable one exists; otherwise a sublane-multiple with
    # the masked tail confined to the last row-block.
    if n_rows * lanes <= target_elems:
        tr = n_rows
        bn = _largest_divisor_leq(
            n_batch, max(1, target_elems // (n_rows * lanes)))
        need_row_mask = False
    else:
        bn = 1
        max_tr = ((target_elems // lanes) // sublane) * sublane
        max_tr = min(n_rows, max(sublane, max_tr))
        if max_tr >= n_rows:
            tr = n_rows
        else:
            tr = None
            for d in range(max_tr, sublane - 1, -1):
                if d % sublane == 0 and n_rows % d == 0:
                    tr = d
                    break
            if tr is None or tr < max_tr // 2:
                tr = max_tr
        need_row_mask = (n_rows % tr) != 0

    grid = (pl.cdiv(n_batch, bn), pl.cdiv(n_rows, tr))

    total = n_batch * n_rows * lanes  # channel-0 elements only
    bytes_accessed = total * 2 * itemsize + grid[0] * 2 * 4

    # 2 inputs x 2 pipeline buffers x block  +  f32 vector accumulator.
    vmem_need = 4 * bn * tr * lanes * itemsize + 2 * tr * lanes * 4
    vmem_limit = int(min(56 << 20, max(32 << 20, vmem_need + (8 << 20))))

    kernel = functools.partial(_dice_kernel, n_rows=n_rows,
                               need_row_mask=need_row_mask)

    partials = pl.pallas_call(
        kernel,
        out_shape=jax.ShapeDtypeStruct((grid[0], 2), jnp.float32),
        grid_spec=pltpu.PrefetchScalarGridSpec(
            num_scalar_prefetch=0,
            grid=grid,
            in_specs=[
                # Channel 0 selected via the index_map (block size 1, block
                # index 0) => only channel-0 bytes are DMA'd from HBM.
                pl.BlockSpec((bn, 1, tr, lanes), lambda bi, ri: (bi, 0, ri, 0)),
                pl.BlockSpec((bn, 1, tr, lanes), lambda bi, ri: (bi, 0, ri, 0)),
            ],
            out_specs=pl.BlockSpec((1, 2), lambda bi, ri: (bi, 0),
                                   memory_space=pltpu.SMEM),
            scratch_shapes=[pltpu.VMEM((2, tr, lanes), jnp.float32)],
        ),
        compiler_params=pltpu.CompilerParams(
            dimension_semantics=("parallel", "arbitrary"),
            vmem_limit_bytes=vmem_limit),
        cost_estimate=pl.CostEstimate(
            flops=3 * total, transcendentals=0, bytes_accessed=bytes_accessed),
    )(yp4, yt4)

    # Tiny wrapper combine of the per-batch-block partials.
    inter = jnp.sum(partials[:, 0])
    tot = jnp.sum(partials[:, 1])
    dsc = (2.0 * inter + SMOOTH) / (tot + SMOOTH)
    return (1.0 - dsc).astype(jnp.float32)


def dice_loss_ref(y_pred, y_true):
    """Pure-JAX reference mirroring the PyTorch module."""
    yp = y_pred[:, 0].reshape(-1).astype(jnp.float32)
    yt = y_true[:, 0].reshape(-1).astype(jnp.float32)
    inter = jnp.sum(yp * yt)
    dsc = (2.0 * inter + SMOOTH) / (jnp.sum(yp) + jnp.sum(yt) + SMOOTH)
    return 1.0 - dsc


if __name__ == "__main__":
    key = jax.random.PRNGKey(0)
    k1, k2 = jax.random.split(key)

    # 1) NCHW demo: sigmoid-like probabilities vs. binary mask.
    x_shape = (2, 4, 16, 16)
    y_pred = jax.random.uniform(k1, x_shape, dtype=jnp.float32)
    y_true = (jax.random.uniform(k2, x_shape, dtype=jnp.float32) > 0.5
              ).astype(jnp.float32)
    loss = jax.block_until_ready(dice_loss(y_pred, y_true))
    ref = jax.block_until_ready(dice_loss_ref(y_pred, y_true))
    assert jnp.allclose(loss, ref, rtol=1e-5, atol=1e-5), (loss, ref)

    # 2) Multi-step grid with a masked tail row-block and per-batch-block
    #    partials (tiny block budget forces tr=8 over n_rows=10).
    x2_shape = (3, 2, 10, 128)
    yp2 = jax.random.uniform(k1, x2_shape, dtype=jnp.float32)
    yt2 = (jax.random.uniform(k2, x2_shape, dtype=jnp.float32) > 0.5
           ).astype(jnp.float32)
    loss2 = jax.block_until_ready(dice_loss(yp2, yt2, target_block_bytes=4096))
    ref2 = jax.block_until_ready(dice_loss_ref(yp2, yt2))
    assert jnp.allclose(loss2, ref2, rtol=1e-5, atol=1e-5), (loss2, ref2)

    # 3) Payload not divisible by 128 (narrow-lane fallback path).
    x3_shape = (2, 3, 7, 9)
    yp3 = jax.random.uniform(k1, x3_shape, dtype=jnp.float32)
    yt3 = (jax.random.uniform(k2, x3_shape, dtype=jnp.float32) > 0.5
           ).astype(jnp.float32)
    loss3 = jax.block_until_ready(dice_loss(yp3, yt3))
    ref3 = jax.block_until_ready(dice_loss_ref(yp3, yt3))
    assert jnp.allclose(loss3, ref3, rtol=1e-5, atol=1e-5), (loss3, ref3)

    print("KERNEL_OK")
</pallas_src>

<mosaic_0001>
module attributes {stable_mosaic.version = 11 : i64} {
  func.func @_dice_kernel(%arg0: i32, %arg1: i32, %arg2: memref<2x1x2x128xf32, #tpu.memory_space<vmem>>, %arg3: memref<2x1x2x128xf32, #tpu.memory_space<vmem>>, %arg4: memref<1x2xf32, #tpu.memory_space<smem>>, %arg5: memref<2x2x128xf32, #tpu.memory_space<vmem>>) attributes {dimension_semantics = [#tpu.dimension_semantics<parallel>, #tpu.dimension_semantics<arbitrary>], iteration_bounds = array<i64: 1, 1>, scalar_prefetch = 0 : i64, scratch_operands = 1 : i64, tpu.core_type = #tpu.core_type<tc>, window_params = [{transform_indices = @transform_0, window_bounds = array<i64: 2, 1, 2, 128>}, {transform_indices = @transform_1, window_bounds = array<i64: 2, 1, 2, 128>}, {transform_indices = @transform_2, window_bounds = array<i64: 1, 2>}]} {
    %c0_i32 = arith.constant 0 : i32
    %0 = arith.cmpi eq, %arg1, %c0_i32 : i32
    %1 = arith.extui %0 : i1 to i32
    %c0_i32_0 = arith.constant 0 : i32
    %2 = arith.cmpi ne, %1, %c0_i32_0 : i32
    scf.if %2 {
      %cst_22 = arith.constant 0.000000e+00 : f32
      %24 = vector.broadcast %cst_22 : f32 to vector<2x2x128xf32>
      %c0_23 = arith.constant 0 : index
      %c0_24 = arith.constant 0 : index
      %c0_25 = arith.constant 0 : index
      %25 = vector.load %arg5[%c0_23, %c0_24, %c0_25] : memref<2x2x128xf32, #tpu.memory_space<vmem>>, vector<2x2x128xf32>
      tpu.vector_store %arg5[%c0_23, %c0_24, %c0_25], %24 {strides = array<i32>} : memref<2x2x128xf32, #tpu.memory_space<vmem>>, vector<2x2x128xf32>,
    } else {
    }
    %c0 = arith.constant 0 : index
    %c0_1 = arith.constant 0 : index
    %c0_2 = arith.constant 0 : index
    %c0_3 = arith.constant 0 : index
    %3 = vector.load %arg2[%c0, %c0_1, %c0_2, %c0_3] : memref<2x1x2x128xf32, #tpu.memory_space<vmem>>, vector<2x1x2x128xf32>
    %c0_4 = arith.constant 0 : index
    %c0_5 = arith.constant 0 : index
    %c0_6 = arith.constant 0 : index
    %c0_7 = arith.constant 0 : index
    %4 = vector.load %arg3[%c0_4, %c0_5, %c0_6, %c0_7] : memref<2x1x2x128xf32, #tpu.memory_space<vmem>>, vector<2x1x2x128xf32>
    %c0_8 = arith.constant 0 : index
    %c0_9 = arith.constant 0 : index
    %c0_10 = arith.constant 0 : index
    %5 = vector.load %arg5[%c0_8, %c0_9, %c0_10] : memref<2x2x128xf32, #tpu.memory_space<vmem>>, vector<1x2x128xf32>
    %6 = vector.shape_cast %5 : vector<1x2x128xf32> to vector<2x128xf32>
    %7 = arith.mulf %3, %4 : vector<2x1x2x128xf32>
    %cst = arith.constant dense<0.000000e+00> : vector<2x128xf32>
    %8 = vector.multi_reduction <add>, %7, %cst [0, 1] : vector<2x1x2x128xf32> to vector<2x128xf32>
    %9 = arith.addf %6, %8 : vector<2x128xf32>
    %c0_11 = arith.constant 0 : index
    %c0_12 = arith.constant 0 : index
    %c0_13 = arith.constant 0 : index
    %10 = vector.load %arg5[%c0_11, %c0_12, %c0_13] : memref<2x2x128xf32, #tpu.memory_space<vmem>>, vector<1x2x128xf32>
    %11 = vector.shape_cast %10 : vector<1x2x128xf32> to vector<2x128xf32>
    %12 = vector.shape_cast %9 : vector<2x128xf32> to vector<1x2x128xf32>
    tpu.vector_store %arg5[%c0_11, %c0_12, %c0_13], %12 {strides = array<i32>} : memref<2x2x128xf32, #tpu.memory_space<vmem>>, vector<1x2x128xf32>,
    %c1 = arith.constant 1 : index
    %c0_14 = arith.constant 0 : index
    %c0_15 = arith.constant 0 : index
    %13 = vector.load %arg5[%c1, %c0_14, %c0_15] : memref<2x2x128xf32, #tpu.memory_space<vmem>>, vector<1x2x128xf32>
    %14 = vector.shape_cast %13 : vector<1x2x128xf32> to vector<2x128xf32>
    %15 = arith.addf %3, %4 : vector<2x1x2x128xf32>
    %cst_16 = arith.constant dense<0.000000e+00> : vector<2x128xf32>
    %16 = vector.multi_reduction <add>, %15, %cst_16 [0, 1] : vector<2x1x2x128xf32> to vector<2x128xf32>
    %17 = arith.addf %14, %16 : vector<2x128xf32>
    %c1_17 = arith.constant 1 : index
    %c0_18 = arith.constant 0 : index
    %c0_19 = arith.constant 0 : index
    %18 = vector.load %arg5[%c1_17, %c0_18, %c0_19] : memref<2x2x128xf32, #tpu.memory_space<vmem>>, vector<1x2x128xf32>
    %19 = vector.shape_cast %18 : vector<1x2x128xf32> to vector<2x128xf32>
    %20 = vector.shape_cast %17 : vector<2x128xf32> to vector<1x2x128xf32>
    tpu.vector_store %arg5[%c1_17, %c0_18, %c0_19], %20 {strides = array<i32>} : memref<2x2x128xf32, #tpu.memory_space<vmem>>, vector<1x2x128xf32>,
    %c0_i32_20 = arith.constant 0 : i32
    %21 = arith.cmpi eq, %arg1, %c0_i32_20 : i32
    %22 = arith.extui %21 : i1 to i32
    %c0_i32_21 = arith.constant 0 : i32
    %23 = arith.cmpi ne, %22, %c0_i32_21 : i32
    scf.if %23 {
      %c0_22 = arith.constant 0 : index
      %c0_23 = arith.constant 0 : index
      %c0_24 = arith.constant 0 : index
      %24 = vector.load %arg5[%c0_22, %c0_23, %c0_24] : memref<2x2x128xf32, #tpu.memory_space<vmem>>, vector<1x2x128xf32>
      %25 = vector.shape_cast %24 : vector<1x2x128xf32> to vector<2x128xf32>
      %26 = vector.shape_cast %25 : vector<2x128xf32> to vector<1x2x128xf32>
      %cst_25 = arith.constant dense<0.000000e+00> : vector<1xf32>
      %27 = vector.multi_reduction <add>, %26, %cst_25 [1, 2] : vector<1x2x128xf32> to vector<1xf32>
      %28 = vector.shape_cast %27 : vector<1xf32> to vector<1x1x1xf32>
      %29 = vector.extract %28[0, 0, 0] : f32 from vector<1x1x1xf32>
      %c0_26 = arith.constant 0 : index
      %c0_27 = arith.constant 0 : index
      %30 = memref.load %arg4[%c0_26, %c0_27] : memref<1x2xf32, #tpu.memory_space<smem>>
      memref.store %29, %arg4[%c0_26, %c0_27] : memref<1x2xf32, #tpu.memory_space<smem>>
      %c1_28 = arith.constant 1 : index
      %c0_29 = arith.constant 0 : index
      %c0_30 = arith.constant 0 : index
      %31 = vector.load %arg5[%c1_28, %c0_29, %c0_30] : memref<2x2x128xf32, #tpu.memory_space<vmem>>, vector<1x2x128xf32>
      %32 = vector.shape_cast %31 : vector<1x2x128xf32> to vector<2x128xf32>
      %33 = vector.shape_cast %32 : vector<2x128xf32> to vector<1x2x128xf32>
      %cst_31 = arith.constant dense<0.000000e+00> : vector<1xf32>
      %34 = vector.multi_reduction <add>, %33, %cst_31 [1, 2] : vector<1x2x128xf32> to vector<1xf32>
      %35 = vector.shape_cast %34 : vector<1xf32> to vector<1x1x1xf32>
      %36 = vector.extract %35[0, 0, 0] : f32 from vector<1x1x1xf32>
      %c0_32 = arith.constant 0 : index
      %c1_33 = arith.constant 1 : index
      %37 = memref.load %arg4[%c0_32, %c1_33] : memref<1x2xf32, #tpu.memory_space<smem>>
      memref.store %36, %arg4[%c0_32, %c1_33] : memref<1x2xf32, #tpu.memory_space<smem>>
    } else {
    }
    return
  }
  func.func @transform_0(%arg0: i32, %arg1: i32) -> (i32, i32, i32, i32) {
    %c0_i32 = arith.constant 0 : i32
    %c0_i32_0 = arith.constant 0 : i32
    %c0_i32_1 = arith.constant 0 : i32
    return %arg0, %c0_i32, %arg1, %c0_i32_0 : i32, i32, i32, i32
  }
  func.func @transform_1(%arg0: i32, %arg1: i32) -> (i32, i32, i32, i32) {
    %c0_i32 = arith.constant 0 : i32
    %c0_i32_0 = arith.constant 0 : i32
    %c0_i32_1 = arith.constant 0 : i32
    return %arg0, %c0_i32, %arg1, %c0_i32_0 : i32, i32, i32, i32
  }
  func.func @transform_2(%arg0: i32, %arg1: i32) -> (i32, i32) {
    %c0_i32 = arith.constant 0 : i32
    %c0_i32_0 = arith.constant 0 : i32
    return %arg0, %c0_i32 : i32, i32
  }
}

</mosaic_0001>

<llo_original>
// kernel: tpu_custom_call.1
$region0: #{tpu_custom_call.1}
  #allocation0 [shape = 'u32[]', space=smem, size = 0x4, offset = 0x4, fixed_abs, tag = 'smem constant byte address 0x4 - core index']
  #allocation1 [shape = 'u32[72,128]{1,0:T(1,128)}', space=vmem, size = 0x9000, scoped, tag = 'internal scratch']
  #allocation2 [shape = 'f32[2,2,128]{2,1,0:T(2,128)}', space=vmem, size = 0x800, scoped, tag = 'scratch operand']
  %s0 = inlined_call_operand.hbm [shape: f32[2,1,2,128], index: 0, kind: input, shape index: {}]
  %s1 = inlined_call_operand.hbm [shape: f32[2,1,2,128], index: 1, kind: input, shape index: {}]
  %s2 = inlined_call_operand.hbm [shape: f32[1,2], index: 2, kind: output, shape index: {}]
  %s3 = sld [smem:[#allocation0]]
  $region34: #{tpu_custom_call.1} parent=0
    _
  %s5 = ssub.s32 1, %s3
  %s6 = scalar_select 0, %s5, %s3
  $region1: #{tpu_custom_call.1} parent=0
    #allocation3 [shape = 'u8[2048]{0}', space=vmem, size = 0x800, scoped, tag = 'input window, operand 0, single buffered']
    #allocation4 [shape = 's32[1]{0}', space=sflag, size = 0x4, scoped, tag = 'scoped memory for tpu_custom_call.1']
    #allocation5 [shape = 's32[1]{0}', space=sflag, size = 0x4, scoped, tag = 'scoped memory for tpu_custom_call.1']
    #allocation6 [shape = 'u8[2048]{0}', space=vmem, size = 0x800, scoped, tag = 'input window, operand 1, single buffered']
    #allocation7 [shape = 's32[1]{0}', space=sflag, size = 0x4, scoped, tag = 'scoped memory for tpu_custom_call.1']
    #allocation8 [shape = 'u8[512]{0}', space=smem, size = 0x200, scoped, tag = 'output window, operand 0, single buffered']
    %7 = vsyncpa [#allocation4], 0
    %8 = vsyncpa [#allocation7], 0
    %9 = vsyncpa [#allocation5], 0
    // Predicated region
    $region2: #{tpu_custom_call.1} parent=1 // pred_check
      _
    $region3: #{tpu_custom_call.1} parent=1 // pred_check_branch
      %11 = sbr.rel (0) target = $region5
    $region4: #{tpu_custom_call.1} parent=1 // pred_region
      %13 = vsyncadd [#allocation4], 0
      %s14 = sshll.u32 %s0, 4
      %s15 = int_to_ptr.hbm [resolvable:$true] %s14
      %s16 = sshll.u32 [#allocation3], 4
      %s17 = int_to_ptr.vmem [resolvable:$true] %s16
      %22 = dma.hbm_to_vmem [thread:$0]  %s15, 64, %s17, [#allocation4], 32, 32, 2
    $region5: #{tpu_custom_call.1} parent=1 // pred_fallthru
      _
    // Predicated region
    $region6: #{tpu_custom_call.1} parent=1 // pred_check
      _
    $region7: #{tpu_custom_call.1} parent=1 // pred_check_branch
      %24 = sbr.rel (0) target = $region9
    $region8: #{tpu_custom_call.1} parent=1 // pred_region
      %26 = vsyncadd [#allocation7], 0
      %s27 = sshll.u32 %s1, 4
      %s28 = int_to_ptr.hbm [resolvable:$true] %s27
      %s29 = sshll.u32 [#allocation6], 4
      %s30 = int_to_ptr.vmem [resolvable:$true] %s29
      %35 = dma.hbm_to_vmem [thread:$0]  %s28, 64, %s30, [#allocation7], 32, 32, 2
    $region9: #{tpu_custom_call.1} parent=1 // pred_fallthru
      _
    // Predicated region
    $region10: #{tpu_custom_call.1} parent=1 // pred_check
      _
    $region11: #{tpu_custom_call.1} parent=1 // pred_check_branch
      %37 = sbr.rel (0) target = $region13
    $region12: #{tpu_custom_call.1} parent=1 // pred_region
      %39 = dma.done [#allocation4], 64
    $region13: #{tpu_custom_call.1} parent=1 // pred_fallthru
      _
    // Predicated region
    $region14: #{tpu_custom_call.1} parent=1 // pred_check
      _
    $region15: #{tpu_custom_call.1} parent=1 // pred_check_branch
      %41 = sbr.rel (0) target = $region17
    $region16: #{tpu_custom_call.1} parent=1 // pred_region
      %43 = dma.done [#allocation7], 64
    $region17: #{tpu_custom_call.1} parent=1 // pred_fallthru
      _
    %p44 = scmp.eq.s32.totalorder 0, 0
    // Predicated region
    $region18: #{tpu_custom_call.1} parent=1 // pred_check
      %p45 = pneg %p44
    $region19: #{tpu_custom_call.1} parent=1 // pred_check_branch
      %47 = sbr.rel (%p45) target = $region21
    $region20: #{tpu_custom_call.1} parent=1 // pred_region
      %48 = vst [vmem:[#allocation2] sm:$0x3] 0.0
      %49 = vst [vmem:[#allocation2 + $0x2] sm:$0x3] 0.0
    $region21: #{tpu_custom_call.1} parent=1 // pred_fallthru
      _
    %v50 = vld [vmem:[#allocation3] sm:$0x3]
    %v51 = vld [vmem:[#allocation3 + $0x2] sm:$0x3]
    %v52 = vld [vmem:[#allocation6] sm:$0x3]
    %v53 = vld [vmem:[#allocation6 + $0x2] sm:$0x3]
    %v54 = vld [vmem:[#allocation2] sm:$0x3]
    %v55 = vmul.f32 %v50, %v52
    %v56 = vmul.f32 %v51, %v53
    %vm57 = vcmask 1041408
    %v58 = vsel %vm57, %v55, 0.0
    %v59 = vsel %vm57, %v56, 0.0
    %v60 = vadd.f32 %v58, %v59
    %v61 = vadd.f32 %v54, %v60
    %62 = vst [vmem:[#allocation2] sm:$0x3] %v61
    %s63 = scalar_lea.vmem [#allocation2], 2
    %v64 = vld [vmem:[%s63] sm:$0x3]
    %v65 = vadd.f32 %v50, %v52
    %v66 = vadd.f32 %v51, %v53
    %v67 = vsel %vm57, %v65, 0.0
    %v68 = vsel %vm57, %v66, 0.0
    %v69 = vadd.f32 %v67, %v68
    %v70 = vadd.f32 %v64, %v69
    %71 = vst [vmem:[%s63] sm:$0x3] %v70
    // Predicated region
    $region22: #{tpu_custom_call.1} parent=1 // pred_check
      %p72 = pneg %p44
    $region23: #{tpu_custom_call.1} parent=1 // pred_check_branch
      %74 = sbr.rel (%p72) target = $region25
    $region24: #{tpu_custom_call.1} parent=1 // pred_region
      %v75 = vld [vmem:[#allocation2] sm:$0x3]
      %v76 = vsel %vm57, %v75, 0.0
      %77 = vadd.xlane.f32.xlu0 %v76
      %v78 = vpop.xlane.xlu0 %77
      %v79 = vrot.slane %v78, 4
      %v80 = vadd.f32 %v78, %v79
      %v81 = vrot.slane %v80, 2
      %v82 = vadd.f32 %v80, %v81
      %v83 = vrot.slane %v82, 1
      %v84 = vadd.f32 %v82, %v83
      %s85 = vtos %v84
      %s86 = scalar_lea.smem [#allocation8], 0
      %87 = sst [smem:[%s86]] %s85
      %v88 = vld [vmem:[%s63] sm:$0x3]
      %v89 = vsel %vm57, %v88, 0.0
      %90 = vadd.xlane.f32.xlu0 %v89
      %v91 = vpop.xlane.xlu0 %90
      %v92 = vrot.slane %v91, 4
      %v93 = vadd.f32 %v91, %v92
      %v94 = vrot.slane %v93, 2
      %v95 = vadd.f32 %v93, %v94
      %v96 = vrot.slane %v95, 1
      %v97 = vadd.f32 %v95, %v96
      %s98 = vtos %v97
      %s99 = scalar_lea.smem [#allocation8], 1
      %100 = sst [smem:[%s99]] %s98
    $region25: #{tpu_custom_call.1} parent=1 // pred_fallthru
      _
    // Predicated region
    $region26: #{tpu_custom_call.1} parent=1 // pred_check
      _
    $region27: #{tpu_custom_call.1} parent=1 // pred_check_branch
      %102 = sbr.rel (0) target = $region29
    $region28: #{tpu_custom_call.1} parent=1 // pred_region
      %104 = vsyncadd [#allocation5], 0
      %s106 = sshll.u32 %s2, 4
      %s107 = int_to_ptr.hbm [resolvable:$true] %s106
      %109 = dma.smem_to_hbm [#allocation8], 16, %s107, [#allocation5]
    $region29: #{tpu_custom_call.1} parent=1 // pred_fallthru
      _
    // Predicated region
    $region30: #{tpu_custom_call.1} parent=1 // pred_check
      _
    $region31: #{tpu_custom_call.1} parent=1 // pred_check_branch
      %111 = sbr.rel (0) target = $region33
    $region32: #{tpu_custom_call.1} parent=1 // pred_region
      %113 = dma.done [#allocation5], 16
    $region33: #{tpu_custom_call.1} parent=1 // pred_fallthru
      _
    %114 = sfence
    %115 = vsyncpa [#allocation4], 1
    %116 = vsyncpa [#allocation7], 1
    %117 = vsyncpa [#allocation5], 1

</llo_original>
